<compile_context>
chip_gen: v5e
topology: v5e:2x2
jax: 0.10.0
libtpu: 0.0.40
codegen_flags: <defaults>
</compile_context>

<pallas_src>
import math

import jax
import jax.numpy as jnp
from jax.experimental import pallas as pl
from jax.experimental.pallas import tpu as pltpu


_COL_CANDIDATES = (512, 256, 128)  # lane-dense last dims (multiples of 128 -> unmasked vst)
_MAX_TILE_BYTES = 4 << 20          # ~4 MiB/buffer; 4 double-buffered bufs = 16 MiB,
                                   # fine on v5e/v6e/v7x with explicit vmem_limit_bytes
_TARGET_GRID_STEPS = 4             # keep >= 2*TCs grid steps so v7x uses both cores
_PALLAS_MIN_ELEMS = 64 * 1024      # below this, fused jnp is strictly faster


def _region_conv_kernel(scale_ref, x_ref, o_ref):
    # scale_ref: SMEM (2,) float32 -> [mean(weight), mean(bias)]
    # x_ref / o_ref: VMEM (block_rows, cols) tiles.  One VPU FMA per vreg;
    # purely HBM-bandwidth bound (intentionally no MXU, no extra buffering).
    o_ref[...] = (scale_ref[0] * x_ref[...] + scale_ref[1]).astype(o_ref.dtype)


def region_convolution(x, weight, bias):
    """x: (B, H, W), weight: (C_out,), bias: (C_out,) -> (B, H, W)."""
    B, H, W = x.shape
    n = B * H * W

    # Collapse the per-channel loop once, outside the kernel.
    scale_w = jnp.mean(weight).astype(jnp.float32)
    scale_b = jnp.mean(bias).astype(jnp.float32)

    # Tiny inputs: skip the custom call entirely; XLA fuses this FMA.
    if n < _PALLAS_MIN_ELEMS:
        return (scale_w * x + scale_b).astype(x.dtype)

    # Pick a lane-dense column count that divides n -> no pad, no output slice.
    cols = next((c for c in _COL_CANDIDATES if n % c == 0), None)
    x_flat = jnp.ravel(x)
    padded_tail = 0
    if cols is None:
        # Rare fallback: pad only the final partial row-group.
        cols = _COL_CANDIDATES[0]
        rows = pl.cdiv(n, cols)
        padded_tail = rows * cols - n
        x_flat = jnp.pad(x_flat, (0, padded_tail))
    else:
        rows = n // cols
    x2d = x_flat.reshape(rows, cols)

    # Block rows: multiple of 8, <= ~4 MiB/tile, and small enough that the
    # grid has >= _TARGET_GRID_STEPS steps (megacore utilization on v7x).
    itemsize = x.dtype.itemsize
    max_rows_per_tile = max(8, (_MAX_TILE_BYTES // (cols * itemsize)) // 8 * 8)
    target_rows = pl.cdiv(rows, _TARGET_GRID_STEPS)
    block_rows = max(8, min(max_rows_per_tile, (target_rows // 8) * 8))
    grid = (pl.cdiv(rows, block_rows),)  # partial final block is fine

    scale = jnp.stack([scale_w, scale_b])

    total_bytes = 2 * rows * cols * itemsize  # read x + write out
    out2d = pl.pallas_call(
        _region_conv_kernel,
        out_shape=jax.ShapeDtypeStruct((rows, cols), x.dtype),
        grid=grid,
        in_specs=[
            pl.BlockSpec(memory_space=pltpu.MemorySpace.SMEM),   # (2,) scalars
            pl.BlockSpec((block_rows, cols), lambda i: (i, 0)),  # x tiles
        ],
        out_specs=pl.BlockSpec((block_rows, cols), lambda i: (i, 0)),
        compiler_params=pltpu.CompilerParams(
            dimension_semantics=("parallel",),   # shard grid across TCs on v7x
            vmem_limit_bytes=40 << 20,           # 4 bufs x 4 MiB + headroom
        ),
        cost_estimate=pl.CostEstimate(
            flops=2 * rows * cols, transcendentals=0, bytes_accessed=total_bytes
        ),
    )(scale, x2d)

    if padded_tail:
        return out2d.reshape(-1)[:n].reshape(B, H, W)
    return out2d.reshape(B, H, W)


def region_convolution_ref(x, weight, bias):
    # Pure-JAX reference of the PyTorch forward (per-channel affine then mean).
    y = x[:, None, :, :] * weight[None, :, None, None] + bias[None, :, None, None]
    return jnp.mean(y, axis=1)


if __name__ == "__main__":
    key = jax.random.PRNGKey(0)
    k_x, k_w, k_b, k_x2 = jax.random.split(key, 4)

    in_channels = 4    # unused by the module's forward (kept for API parity)
    out_channels = 8

    # Deterministic Conv2d(1, out_channels, kernel_size=1) parameter init
    # (uniform in +/- 1/sqrt(fan_in), fan_in = 1), flattened to (C_out,).
    fan_in = 1
    bound = 1.0 / math.sqrt(fan_in)
    weight = jax.random.uniform(
        k_w, (out_channels,), jnp.float32, minval=-bound, maxval=bound
    )
    bias = jax.random.uniform(
        k_b, (out_channels,), jnp.float32, minval=-bound, maxval=bound
    )

    # Small shape from the module spec -> fused jnp fast path.
    x_small = jax.random.normal(k_x, (2, 16, 16), dtype=jnp.float32)
    out_small = jax.block_until_ready(region_convolution(x_small, weight, bias))
    ref_small = region_convolution_ref(x_small, weight, bias)
    assert out_small.shape == x_small.shape
    assert jnp.allclose(out_small, ref_small, atol=1e-5, rtol=1e-5)

    # Larger shape -> exercises the Pallas streaming kernel (>= 4 grid steps,
    # no pad / no slice since 4*64*512 is divisible by 512).
    x_big = jax.random.normal(k_x2, (4, 64, 512), dtype=jnp.float32)
    out_big = jax.block_until_ready(region_convolution(x_big, weight, bias))
    ref_big = region_convolution_ref(x_big, weight, bias)
    assert out_big.shape == x_big.shape
    assert jnp.allclose(out_big, ref_big, atol=1e-5, rtol=1e-5)

    print("KERNEL_OK")
</pallas_src>

<mosaic_0001>
module attributes {stable_mosaic.version = 11 : i64} {
  func.func @_region_conv_kernel(%arg0: i32, %arg1: memref<2xf32, #tpu.memory_space<smem>>, %arg2: memref<64x512xf32, #tpu.memory_space<vmem>>, %arg3: memref<64x512xf32, #tpu.memory_space<vmem>>) attributes {dimension_semantics = [#tpu.dimension_semantics<parallel>], iteration_bounds = array<i64: 4>, scalar_prefetch = 0 : i64, scratch_operands = 0 : i64, tpu.core_type = #tpu.core_type<tc>, window_params = [{transform_indices = @transform_0, window_bounds = array<i64: 2>}, {transform_indices = @transform_1, window_bounds = array<i64: 64, 512>}, {transform_indices = @transform_2, window_bounds = array<i64: 64, 512>}]} {
    %c0 = arith.constant 0 : index
    %0 = memref.load %arg1[%c0] : memref<2xf32, #tpu.memory_space<smem>>
    %c0_0 = arith.constant 0 : index
    %c0_1 = arith.constant 0 : index
    %1 = vector.load %arg2[%c0_0, %c0_1] : memref<64x512xf32, #tpu.memory_space<vmem>>, vector<64x512xf32>
    %2 = vector.broadcast %0 : f32 to vector<64x512xf32>
    %3 = arith.mulf %2, %1 : vector<64x512xf32>
    %c1 = arith.constant 1 : index
    %4 = memref.load %arg1[%c1] : memref<2xf32, #tpu.memory_space<smem>>
    %5 = vector.broadcast %4 : f32 to vector<64x512xf32>
    %6 = arith.addf %3, %5 : vector<64x512xf32>
    %c0_2 = arith.constant 0 : index
    %c0_3 = arith.constant 0 : index
    %7 = vector.load %arg3[%c0_2, %c0_3] : memref<64x512xf32, #tpu.memory_space<vmem>>, vector<64x512xf32>
    tpu.vector_store %arg3[%c0_2, %c0_3], %6 {strides = array<i32>} : memref<64x512xf32, #tpu.memory_space<vmem>>, vector<64x512xf32>,
    return
  }
  func.func @transform_0(%arg0: i32) -> i32 {
    %c0_i32 = arith.constant 0 : i32
    %c0_i32_0 = arith.constant 0 : i32
    return %c0_i32 : i32
  }
  func.func @transform_1(%arg0: i32) -> (i32, i32) {
    %c0_i32 = arith.constant 0 : i32
    %c0_i32_0 = arith.constant 0 : i32
    return %arg0, %c0_i32 : i32, i32
  }
  func.func @transform_2(%arg0: i32) -> (i32, i32) {
    %c0_i32 = arith.constant 0 : i32
    %c0_i32_0 = arith.constant 0 : i32
    return %arg0, %c0_i32 : i32, i32
  }
}

</mosaic_0001>

<llo_original>
// kernel: tpu_custom_call.1
$region0: #{tpu_custom_call.1}
  #allocation0 [shape = 'u32[]', space=smem, size = 0x4, offset = 0x4, fixed_abs, tag = 'smem constant byte address 0x4 - core index']
  #allocation1 [shape = 'u32[72,128]{1,0:T(1,128)}', space=vmem, size = 0x9000, scoped, tag = 'internal scratch']
  %s0 = inlined_call_operand.hbm [shape: f32[2], index: 0, kind: input, shape index: {}]
  %s1 = inlined_call_operand.hbm [shape: f32[256,512], index: 1, kind: input, shape index: {}]
  %s2 = inlined_call_operand.hbm [shape: f32[256,512], index: 2, kind: output, shape index: {}]
  %s3 = sld [smem:[#allocation0]]
  $region49: #{tpu_custom_call.1} parent=0
    _
  %s5 = ssub.s32 1, %s3
  %s6 = scalar_select 0, %s5, %s3
  $region1: #{tpu_custom_call.1} parent=0
    #allocation2 [shape = 'u8[512]{0}', space=smem, size = 0x200, scoped, tag = 'input window, operand 0, single buffered']
    #allocation3 [shape = 's32[2]{0}', space=sflag, size = 0x8, scoped, tag = 'scoped memory for tpu_custom_call.1']
    #allocation4 [shape = 's32[2]{0}', space=sflag, size = 0x8, scoped, tag = 'scoped memory for tpu_custom_call.1']
    #allocation5 [shape = 's32[2]{0}', space=sflag, size = 0x8, scoped, tag = 'scoped memory for tpu_custom_call.1']
    #allocation6 [shape = 'u8[262144]{0}', space=vmem, size = 0x40000, scoped, tag = 'input window, operand 1']
    #allocation7 [shape = 'u8[262144]{0}', space=vmem, size = 0x40000, scoped, tag = 'output window, operand 0']
    %7 = vsyncpa [#allocation5], 0
    %8 = vsyncpa [#allocation3], 0
    %s9 = scalar_lea.sflag [#allocation3], 1
    %10 = vsyncpa %s9, 0
    %11 = vsyncpa [#allocation4], 0
    %s12 = scalar_lea.sflag [#allocation4], 1
    %13 = vsyncpa %s12, 0
    loop: start=0, step=1, limit=6
    $region2: #{tpu_custom_call.1} parent=1 // loop_pre_header
      _
    $region3: #{tpu_custom_call.1} parent=1 // loop_header
      %s15 = sphi 0, %s19
      %p16 = scmp.ge.s32.totalorder %s15, 6
      %s23 = sphi 0, %s23
      %s25 = sphi 0, %s23
      %s26 = sphi 0, %s25
      %s40 = sphi 0, %s26
      %s46 = sphi 0, %s48
      %s49 = sphi 0, %s46
      %s50 = sphi 0, %s49
      %s66 = sphi 0, %s50
      %s72 = sphi 0, %s74
      %s75 = sphi 0, %s72
      %s76 = sphi 0, %s75
      %s92 = sphi 0, %s76
    $region4: #{tpu_custom_call.1} parent=1 // loop_header_branch
      %18 = sbr.rel (%p16) target = $region8
    $region5: #{tpu_custom_call.1} parent=1 // loop_body
      %s20 = ssub.s32 %s15, 1
      %s21 = ssub.s32 %s15, 2
      %s22 = sadd.s32 %s15, 1
      %s24 = sadd.s32 %s23, 1
      %p27 = scmp.eq.s32.totalorder %s15, 3
      %p28 = scmp.ne.s32.totalorder %s23, %s25
      %p29 = scmp.eq.s32.totalorder %s15, 0
      %p30 = por %p28, %p29
      %p31 = scmp.ne.s32.totalorder %s23, %s25
      %p32 = scmp.eq.s32.totalorder %s20, 3
      %p33 = por %p31, %p32
      %p34 = scmp.ne.s32.totalorder %s25, %s26
      %p35 = scmp.eq.s32.totalorder %s20, 0
      %p36 = por %p34, %p35
      %p37 = scmp.ne.s32.totalorder %s25, %s26
      %p38 = scmp.eq.s32.totalorder %s21, 3
      %p39 = por %p37, %p38
      %p41 = scmp.ne.s32.totalorder %s26, %s40
      %p42 = scmp.eq.s32.totalorder %s21, 0
      %p43 = por %p41, %p42
      %s44 = ssub.s32 %s15, %s22
      %p45 = scmp.eq.s32.totalorder %s44, 0
      %s47 = sadd.s32 %s46, 1
      %s48 = scalar_select %p45, %s46, %s47
      %p51 = pneg %p45
      %p52 = scmp.eq.s32.totalorder %s15, 3
      %p53 = por %p51, %p52
      %p54 = scmp.ne.s32.totalorder %s46, %s49
      %p55 = scmp.eq.s32.totalorder %s15, 0
      %p56 = por %p54, %p55
      %p57 = scmp.ne.s32.totalorder %s46, %s49
      %p58 = scmp.eq.s32.totalorder %s20, 3
      %p59 = por %p57, %p58
      %p60 = scmp.ne.s32.totalorder %s49, %s50
      %p61 = scmp.eq.s32.totalorder %s20, 0
      %p62 = por %p60, %p61
      %p63 = scmp.ne.s32.totalorder %s49, %s50
      %p64 = scmp.eq.s32.totalorder %s21, 3
      %p65 = por %p63, %p64
      %p67 = scmp.ne.s32.totalorder %s50, %s66
      %p68 = scmp.eq.s32.totalorder %s21, 0
      %p69 = por %p67, %p68
      %s70 = ssub.s32 %s15, %s22
      %p71 = scmp.eq.s32.totalorder %s70, 0
      %s73 = sadd.s32 %s72, 1
      %s74 = scalar_select %p71, %s72, %s73
      %p77 = pneg %p71
      %p78 = scmp.eq.s32.totalorder %s15, 3
      %p79 = por %p77, %p78
      %p80 = scmp.ne.s32.totalorder %s72, %s75
      %p81 = scmp.eq.s32.totalorder %s15, 0
      %p82 = por %p80, %p81
      %p83 = scmp.ne.s32.totalorder %s72, %s75
      %p84 = scmp.eq.s32.totalorder %s20, 3
      %p85 = por %p83, %p84
      %p86 = scmp.ne.s32.totalorder %s75, %s76
      %p87 = scmp.eq.s32.totalorder %s20, 0
      %p88 = por %p86, %p87
      %p89 = scmp.ne.s32.totalorder %s75, %s76
      %p90 = scmp.eq.s32.totalorder %s21, 3
      %p91 = por %p89, %p90
      %p93 = scmp.ne.s32.totalorder %s76, %s92
      %p94 = scmp.eq.s32.totalorder %s21, 0
      %p95 = por %p93, %p94
      %p96 = scmp.le.s32.totalorder 1, %s15
      %p97 = scmp.lt.s32.totalorder %s15, 5
      %p98 = pnand %p96, %p97
      %p99 = pneg %p98
      // Predicated region
      $region9: #{tpu_custom_call.1} parent=5 // pred_check
        _
      $region10: #{tpu_custom_call.1} parent=5 // pred_check_branch
        %101 = sbr.rel (%p98) target = $region12
      $region11: #{tpu_custom_call.1} parent=5 // pred_region
        %s102 = ssub.s32 %s15, 1
        // Predicated region
        $region13: #{tpu_custom_call.1} parent=11 // pred_check
          %p103 = pneg %p36
        $region14: #{tpu_custom_call.1} parent=11 // pred_check_branch
          %105 = sbr.rel (%p103) target = $region16
        $region15: #{tpu_custom_call.1} parent=11 // pred_region
          %107 = vsyncadd [#allocation5], 0
          %s109 = sshll.u32 %s0, 4
          %s110 = int_to_ptr.hbm [resolvable:$true] %s109
          %112 = dma.hbm_to_smem %s110, 16, [#allocation2], [#allocation5]
        $region16: #{tpu_custom_call.1} parent=11 // pred_fallthru
          _
      $region12: #{tpu_custom_call.1} parent=5 // pred_fallthru
        _
      %p113 = scmp.lt.s32.totalorder %s15, 4
      // Predicated region
      $region17: #{tpu_custom_call.1} parent=5 // pred_check
        %p114 = pneg %p113
      $region18: #{tpu_custom_call.1} parent=5 // pred_check_branch
        %116 = sbr.rel (%p114) target = $region20
      $region19: #{tpu_custom_call.1} parent=5 // pred_region
        // Predicated region
        $region21: #{tpu_custom_call.1} parent=19 // pred_check
          %p117 = pneg %p56
        $region22: #{tpu_custom_call.1} parent=19 // pred_check_branch
          %119 = sbr.rel (%p117) target = $region24
        $region23: #{tpu_custom_call.1} parent=19 // pred_region
          %s120 = sand.u32 %s46, 1
          %s121 = scalar_lea.sflag [#allocation3], %s120
          %s122 = sand.u32 %s46, 1
          %s123 = smul.addr %s122, 256
          %s124 = scalar_lea.vmem [#allocation6], %s123
          %s125 = smul.u32 8, %s15
          %127 = vsyncadd %s121, 0
          %s128 = smul.addr %s125, 4
          %s129 = smul.addr %s128, 8
          %s130 = scalar_lea.hbm %s1, %s129
          %s131 = sshll.u32 %s130, 4
          %s132 = int_to_ptr.hbm [resolvable:$true] %s131
          %s133 = sshll.u32 %s124, 4
          %s134 = int_to_ptr.vmem [resolvable:$true] %s133
          %139 = dma.hbm_to_vmem [thread:$0]  %s132, 4096, %s134, %s121, 512, 512, 32
        $region24: #{tpu_custom_call.1} parent=19 // pred_fallthru
          _
      $region20: #{tpu_custom_call.1} parent=5 // pred_fallthru
        _
      %p140 = scmp.le.s32.totalorder 1, %s15
      %p141 = scmp.lt.s32.totalorder %s15, 5
      %p142 = pnand %p140, %p141
      %p143 = pneg %p142
      // Predicated region
      $region25: #{tpu_custom_call.1} parent=5 // pred_check
        _
      $region26: #{tpu_custom_call.1} parent=5 // pred_check_branch
        %145 = sbr.rel (%p142) target = $region28
      $region27: #{tpu_custom_call.1} parent=5 // pred_region
        %s146 = ssub.s32 %s15, 1
        // Predicated region
        $region29: #{tpu_custom_call.1} parent=27 // pred_check
          %p147 = pneg %p36
        $region30: #{tpu_custom_call.1} parent=27 // pred_check_branch
          %149 = sbr.rel (%p147) target = $region32
        $region31: #{tpu_custom_call.1} parent=27 // pred_region
          %151 = dma.done [#allocation5], 16
        $region32: #{tpu_custom_call.1} parent=27 // pred_fallthru
          _
        %s152 = sand.u32 %s49, 1
        %s153 = scalar_lea.sflag [#allocation3], %s152
        %s154 = sand.u32 %s49, 1
        %s155 = smul.addr %s154, 256
        %s156 = scalar_lea.vmem [#allocation6], %s155
        // Predicated region
        $region33: #{tpu_custom_call.1} parent=27 // pred_check
          %p157 = pneg %p62
        $region34: #{tpu_custom_call.1} parent=27 // pred_check_branch
          %159 = sbr.rel (%p157) target = $region36
        $region35: #{tpu_custom_call.1} parent=27 // pred_region
          %161 = dma.done %s153, 4096
        $region36: #{tpu_custom_call.1} parent=27 // pred_fallthru
          _
        %162 = sfence
        %p163 = pneg %p36
        %p164 = pneg %p33
        %s165 = sand.u32 %s49, 1
        %s166 = scalar_lea.sflag [#allocation3], %s165
        %s167 = sand.u32 %s49, 1
        %s168 = smul.addr %s167, 256
        %s169 = scalar_lea.vmem [#allocation6], %s168
        %p170 = pneg %p62
        %p171 = pneg %p59
        %p172 = pneg %p88
        %p173 = pneg %p85
        %s174 = sand.u32 %s75, 1
        %s175 = scalar_lea.sflag [#allocation4], %s174
        %s176 = sand.u32 %s75, 1
        %s177 = smul.addr %s176, 256
        %s178 = scalar_lea.vmem [#allocation7], %s177
        %s179 = smul.u32 8, %s20
        %s180 = smul.u32 8, %s20
        %s181 = sld [smem:[#allocation2]]
        %v182 = vld [vmem:[%s156] sm:$0xff]
        %v183 = vld [vmem:[%s156 + $0x8] sm:$0xff]
        %v184 = vld [vmem:[%s156 + $0x10] sm:$0xff]
        %v185 = vld [vmem:[%s156 + $0x18] sm:$0xff]
        %v186 = vld [vmem:[%s156 + $0x20] sm:$0xff]
        %v187 = vld [vmem:[%s156 + $0x28] sm:$0xff]
        %v188 = vld [vmem:[%s156 + $0x30] sm:$0xff]
        %v189 = vld [vmem:[%s156 + $0x38] sm:$0xff]
        %v190 = vld [vmem:[%s156 + $0x40] sm:$0xff]
        %v191 = vld [vmem:[%s156 + $0x48] sm:$0xff]
        %v192 = vld [vmem:[%s156 + $0x50] sm:$0xff]
        %v193 = vld [vmem:[%s156 + $0x58] sm:$0xff]
        %v194 = vld [vmem:[%s156 + $0x60] sm:$0xff]
        %v195 = vld [vmem:[%s156 + $0x68] sm:$0xff]
        %v196 = vld [vmem:[%s156 + $0x70] sm:$0xff]
        %v197 = vld [vmem:[%s156 + $0x78] sm:$0xff]
        %v198 = vld [vmem:[%s156 + $0x80] sm:$0xff]
        %v199 = vld [vmem:[%s156 + $0x88] sm:$0xff]
        %v200 = vld [vmem:[%s156 + $0x90] sm:$0xff]
        %v201 = vld [vmem:[%s156 + $0x98] sm:$0xff]
        %v202 = vld [vmem:[%s156 + $0xa0] sm:$0xff]
        %v203 = vld [vmem:[%s156 + $0xa8] sm:$0xff]
        %v204 = vld [vmem:[%s156 + $0xb0] sm:$0xff]
        %v205 = vld [vmem:[%s156 + $0xb8] sm:$0xff]
        %v206 = vld [vmem:[%s156 + $0xc0] sm:$0xff]
        %v207 = vld [vmem:[%s156 + $0xc8] sm:$0xff]
        %v208 = vld [vmem:[%s156 + $0xd0] sm:$0xff]
        %v209 = vld [vmem:[%s156 + $0xd8] sm:$0xff]
        %v210 = vld [vmem:[%s156 + $0xe0] sm:$0xff]
        %v211 = vld [vmem:[%s156 + $0xe8] sm:$0xff]
        %v212 = vld [vmem:[%s156 + $0xf0] sm:$0xff]
        %v213 = vld [vmem:[%s156 + $0xf8] sm:$0xff]
        %v214 = vstv %s181
        %v215 = vmul.f32 %v214, %v182
        %v216 = vmul.f32 %v214, %v183
        %v217 = vmul.f32 %v214, %v184
        %v218 = vmul.f32 %v214, %v185
        %v219 = vmul.f32 %v214, %v186
        %v220 = vmul.f32 %v214, %v187
        %v221 = vmul.f32 %v214, %v188
        %v222 = vmul.f32 %v214, %v189
        %v223 = vmul.f32 %v214, %v190
        %v224 = vmul.f32 %v214, %v191
        %v225 = vmul.f32 %v214, %v192
        %v226 = vmul.f32 %v214, %v193
        %v227 = vmul.f32 %v214, %v194
        %v228 = vmul.f32 %v214, %v195
        %v229 = vmul.f32 %v214, %v196
        %v230 = vmul.f32 %v214, %v197
        %v231 = vmul.f32 %v214, %v198
        %v232 = vmul.f32 %v214, %v199
        %v233 = vmul.f32 %v214, %v200
        %v234 = vmul.f32 %v214, %v201
        %v235 = vmul.f32 %v214, %v202
        %v236 = vmul.f32 %v214, %v203
        %v237 = vmul.f32 %v214, %v204
        %v238 = vmul.f32 %v214, %v205
        %v239 = vmul.f32 %v214, %v206
        %v240 = vmul.f32 %v214, %v207
        %v241 = vmul.f32 %v214, %v208
        %v242 = vmul.f32 %v214, %v209
        %v243 = vmul.f32 %v214, %v210
        %v244 = vmul.f32 %v214, %v211
        %v245 = vmul.f32 %v214, %v212
        %v246 = vmul.f32 %v214, %v213
        %s247 = sld [smem:[#allocation2 + $0x1]]
        %v248 = vstv %s247
        %v249 = vadd.f32 %v215, %v248
        %v250 = vadd.f32 %v216, %v248
        %v251 = vadd.f32 %v217, %v248
        %v252 = vadd.f32 %v218, %v248
        %v253 = vadd.f32 %v219, %v248
        %v254 = vadd.f32 %v220, %v248
        %v255 = vadd.f32 %v221, %v248
        %v256 = vadd.f32 %v222, %v248
        %v257 = vadd.f32 %v223, %v248
        %v258 = vadd.f32 %v224, %v248
        %v259 = vadd.f32 %v225, %v248
        %v260 = vadd.f32 %v226, %v248
        %v261 = vadd.f32 %v227, %v248
        %v262 = vadd.f32 %v228, %v248
        %v263 = vadd.f32 %v229, %v248
        %v264 = vadd.f32 %v230, %v248
        %v265 = vadd.f32 %v231, %v248
        %v266 = vadd.f32 %v232, %v248
        %v267 = vadd.f32 %v233, %v248
        %v268 = vadd.f32 %v234, %v248
        %v269 = vadd.f32 %v235, %v248
        %v270 = vadd.f32 %v236, %v248
        %v271 = vadd.f32 %v237, %v248
        %v272 = vadd.f32 %v238, %v248
        %v273 = vadd.f32 %v239, %v248
        %v274 = vadd.f32 %v240, %v248
        %v275 = vadd.f32 %v241, %v248
        %v276 = vadd.f32 %v242, %v248
        %v277 = vadd.f32 %v243, %v248
        %v278 = vadd.f32 %v244, %v248
        %v279 = vadd.f32 %v245, %v248
        %v280 = vadd.f32 %v246, %v248
        %281 = vst [vmem:[%s178] sm:$0xff] %v249
        %282 = vst [vmem:[%s178 + $0x8] sm:$0xff] %v250
        %283 = vst [vmem:[%s178 + $0x10] sm:$0xff] %v251
        %284 = vst [vmem:[%s178 + $0x18] sm:$0xff] %v252
        %285 = vst [vmem:[%s178 + $0x20] sm:$0xff] %v253
        %286 = vst [vmem:[%s178 + $0x28] sm:$0xff] %v254
        %287 = vst [vmem:[%s178 + $0x30] sm:$0xff] %v255
        %288 = vst [vmem:[%s178 + $0x38] sm:$0xff] %v256
        %289 = vst [vmem:[%s178 + $0x40] sm:$0xff] %v257
        %290 = vst [vmem:[%s178 + $0x48] sm:$0xff] %v258
        %291 = vst [vmem:[%s178 + $0x50] sm:$0xff] %v259
        %292 = vst [vmem:[%s178 + $0x58] sm:$0xff] %v260
        %293 = vst [vmem:[%s178 + $0x60] sm:$0xff] %v261
        %294 = vst [vmem:[%s178 + $0x68] sm:$0xff] %v262
        %295 = vst [vmem:[%s178 + $0x70] sm:$0xff] %v263
        %296 = vst [vmem:[%s178 + $0x78] sm:$0xff] %v264
        %297 = vst [vmem:[%s178 + $0x80] sm:$0xff] %v265
        %298 = vst [vmem:[%s178 + $0x88] sm:$0xff] %v266
        %299 = vst [vmem:[%s178 + $0x90] sm:$0xff] %v267
        %300 = vst [vmem:[%s178 + $0x98] sm:$0xff] %v268
        %301 = vst [vmem:[%s178 + $0xa0] sm:$0xff] %v269
        %302 = vst [vmem:[%s178 + $0xa8] sm:$0xff] %v270
        %303 = vst [vmem:[%s178 + $0xb0] sm:$0xff] %v271
        %304 = vst [vmem:[%s178 + $0xb8] sm:$0xff] %v272
        %305 = vst [vmem:[%s178 + $0xc0] sm:$0xff] %v273
        %306 = vst [vmem:[%s178 + $0xc8] sm:$0xff] %v274
        %307 = vst [vmem:[%s178 + $0xd0] sm:$0xff] %v275
        %308 = vst [vmem:[%s178 + $0xd8] sm:$0xff] %v276
        %309 = vst [vmem:[%s178 + $0xe0] sm:$0xff] %v277
        %310 = vst [vmem:[%s178 + $0xe8] sm:$0xff] %v278
        %311 = vst [vmem:[%s178 + $0xf0] sm:$0xff] %v279
        %312 = vst [vmem:[%s178 + $0xf8] sm:$0xff] %v280
        %s313 = sand.u32 %s75, 1
        %s314 = scalar_lea.sflag [#allocation4], %s313
        %s315 = sand.u32 %s75, 1
        %s316 = smul.addr %s315, 256
        %s317 = scalar_lea.vmem [#allocation7], %s316
        // Predicated region
        $region37: #{tpu_custom_call.1} parent=27 // pred_check
          %p318 = pneg %p85
        $region38: #{tpu_custom_call.1} parent=27 // pred_check_branch
          %320 = sbr.rel (%p318) target = $region40
        $region39: #{tpu_custom_call.1} parent=27 // pred_region
          %s321 = smul.u32 8, %s20
          %323 = vsyncadd %s314, 0
          %s324 = smul.addr %s321, 4
          %s325 = smul.addr %s324, 8
          %s326 = scalar_lea.hbm %s2, %s325
          %s327 = sshll.u32 %s317, 4
          %s328 = int_to_ptr.vmem [resolvable:$true] %s327
          %s329 = sshll.u32 %s326, 4
          %s330 = int_to_ptr.hbm [resolvable:$true] %s329
          %335 = dma.vmem_to_hbm [thread:$0]  %s328, 4096, %s330, %s314, 512, 512, 32
        $region40: #{tpu_custom_call.1} parent=27 // pred_fallthru
          _
      $region28: #{tpu_custom_call.1} parent=5 // pred_fallthru
        _
      %p336 = scmp.le.s32.totalorder 2, %s15
      // Predicated region
      $region41: #{tpu_custom_call.1} parent=5 // pred_check
        %p337 = pneg %p336
      $region42: #{tpu_custom_call.1} parent=5 // pred_check_branch
        %339 = sbr.rel (%p337) target = $region44
      $region43: #{tpu_custom_call.1} parent=5 // pred_region
        %s340 = ssub.s32 %s15, 2
        // Predicated region
        $region45: #{tpu_custom_call.1} parent=43 // pred_check
          %p341 = pneg %p91
        $region46: #{tpu_custom_call.1} parent=43 // pred_check_branch
          %343 = sbr.rel (%p341) target = $region48
        $region47: #{tpu_custom_call.1} parent=43 // pred_region
          %s344 = sand.u32 %s76, 1
          %s345 = scalar_lea.sflag [#allocation4], %s344
          %s346 = sand.u32 %s76, 1
          %s347 = smul.addr %s346, 256
          %s348 = scalar_lea.vmem [#allocation7], %s347
          %350 = dma.done %s345, 4096
        $region48: #{tpu_custom_call.1} parent=43 // pred_fallthru
          _
      $region44: #{tpu_custom_call.1} parent=5 // pred_fallthru
        _
    $region6: #{tpu_custom_call.1} parent=1 // loop_footer
      %s19 = sadd.s32 1, %s15
    $region7: #{tpu_custom_call.1} parent=1 // loop_footer_branch
      %14 = sbr.rel target = $region3
    $region8: #{tpu_custom_call.1} parent=1 // loop_exit
      _
    %351 = vsyncpa [#allocation3], 1
    %s352 = scalar_lea.sflag [#allocation3], 1
    %353 = vsyncpa %s352, 1
    %354 = vsyncpa [#allocation4], 1
    %s355 = scalar_lea.sflag [#allocation4], 1
    %356 = vsyncpa %s355, 1
    %357 = vsyncpa [#allocation5], 1
    %s358 = scalar_lea.sflag [#allocation5], 1
    %359 = vsyncpa %s358, 1

</llo_original>
